<compile_context>
chip_gen: v6e
topology: v6e:2x2x1
jax: 0.10.0
libtpu: 0.0.40
codegen_flags: <defaults>
</compile_context>

<pallas_src>
import functools

import jax
import jax.numpy as jnp
from jax.experimental import pallas as pl
from jax.experimental.pallas import tpu as pltpu


def _shift_rows(v, d, H):
    """Return s with s[h, :] = v[h + d, :], zero-filled where h + d is outside [0, H).

    pltpu.roll (XLU sublane rotate) + iota mask (VPU select): stays in vregs, no hidden
    VMEM copies from slicing across the 8-sublane boundary.
    """
    if d == 0:
        return v
    rolled = pltpu.roll(v, shift=(-d) % H, axis=0)           # rolled[h] = v[(h+d) mod H]
    row = jax.lax.broadcasted_iota(jnp.int32, v.shape, 0)
    valid = (row + d >= 0) & (row + d < H)
    return jnp.where(valid, rolled, jnp.zeros_like(rolled))


def _conv_stack_kernel(x_ref, w1_ref, b1_ref, w2_ref, b2_ref, o_ref, *, K, pad, H):
    """Fused y = ReLU(conv2(ReLU(conv1(x)))) for one batch element.

    x_ref : (1, H, W*C_in)  f32 input slab (channels folded onto lanes)
    w*_ref: (K*W*C_lin, W*C_out) stacked banded matmul weights (kw taps, horizontal
            zero padding AND kh taps all folded into the contraction dim)
    b*_ref: (1, W*C_out) f32 bias tiled along W (lane-dense)
    o_ref : (1, H, W*C_out) lane-dense output slab
    """

    def conv_relu(v_f32, w_ref, b_ref):
        # Fold the K vertical taps into the contraction: ONE MXU matmul per conv.
        lhs = jnp.concatenate(
            [_shift_rows(v_f32, kh - pad, H) for kh in range(K)], axis=1)
        acc = jnp.dot(lhs.astype(w_ref.dtype), w_ref[...],
                      preferred_element_type=jnp.float32)
        return jnp.maximum(acc + b_ref[...], 0.0)            # bias + ReLU, lane-dense VPU

    h1 = conv_relu(x_ref[0].astype(jnp.float32), w1_ref, b1_ref)   # (H, W*C_out) f32, vreg-resident
    h2 = conv_relu(h1, w2_ref, b2_ref)
    o_ref[0] = h2.astype(o_ref.dtype)                        # unmasked lane-dense store


def _band_weights(w_oihw, W, pad):
    """(C_out, C_in, KH, KW) -> (KH*W*C_in, W*C_out) stacked banded matmul weights.

    out[(kh*W + wi)*C_in + ci, wo*C_out + co] = w[co, ci, kh, wi - wo + pad]
    (zero where the kw index falls outside [0, KW): this implements the horizontal
    "same" zero padding inside the contraction).
    """
    C_out, C_in, KH, KW = w_oihw.shape
    w = jnp.transpose(w_oihw, (2, 3, 1, 0))                  # (KH, KW, C_in, C_out)
    wi = jnp.arange(W)[:, None]                              # input column
    wo = jnp.arange(W)[None, :]                              # output column
    kw = wi - wo + pad                                       # (W, W)
    valid = (kw >= 0) & (kw < KW)
    kw_c = jnp.where(valid, kw, 0)
    big = w[:, kw_c]                                         # (KH, Win, Wout, C_in, C_out)
    big = jnp.where(valid[None, :, :, None, None], big, 0.0)
    big = jnp.transpose(big, (0, 1, 3, 2, 4))                # (KH, Win, C_in, Wout, C_out)
    return big.reshape(KH * W * C_in, W * C_out)


def prepare_conv_stack_params(w1_oihw, b1, w2_oihw, b2, W, kernel_size=3,
                              dilation_rate=1, weight_dtype=jnp.bfloat16):
    """One-time (parameter-load-time) prep: stacked banded weights + W-tiled biases."""
    assert dilation_rate == 1, "dilation_rate>1 not wired here"
    K = kernel_size
    assert K % 2 == 1, "odd kernel size expected"
    pad = (K + (K - 1) * (dilation_rate - 1) - 1) // 2
    C_out = w1_oihw.shape[0]
    w1b = _band_weights(w1_oihw, W, pad).astype(weight_dtype)    # (K*W*C_in,  W*C_out)
    w2b = _band_weights(w2_oihw, W, pad).astype(weight_dtype)    # (K*W*C_out, W*C_out)
    b1r = jnp.tile(b1, W).reshape(1, W * C_out).astype(jnp.float32)
    b2r = jnp.tile(b2, W).reshape(1, W * C_out).astype(jnp.float32)
    return w1b, b1r, w2b, b2r


def _const_spec(shape):
    """BlockSpec for a grid-constant operand; single pipeline buffer when supported."""
    ndim = len(shape)
    index_map = lambda n: (0,) * ndim
    try:
        return pl.BlockSpec(shape, index_map, pipeline_mode=pl.Buffered(1))
    except TypeError:  # older jax without pipeline_mode kwarg
        return pl.BlockSpec(shape, index_map)


@functools.partial(jax.jit, static_argnames=("kernel_size", "dilation_rate"))
def conv_stack_apply(x_nchw, w1b, b1r, w2b, b2r, kernel_size=3, dilation_rate=1):
    """ConvStack.forward (stack_num=2, ReLU, batch_norm=False) on pre-banded params."""
    K = kernel_size
    pad = (K + (K - 1) * (dilation_rate - 1) - 1) // 2
    N, C_in, H, W = x_nchw.shape
    WC_in = W * C_in
    WC_out = b1r.shape[-1]
    C_out = WC_out // W
    assert w1b.shape == (K * WC_in, WC_out)
    assert w2b.shape == (K * WC_out, WC_out)
    assert H > pad

    # NCHW -> (N, H, W*C_in): channels folded onto the lane dimension (glue, jitted once).
    x2d = jnp.transpose(x_nchw, (0, 2, 3, 1)).reshape(N, H, WC_in).astype(jnp.float32)

    kernel = functools.partial(_conv_stack_kernel, K=K, pad=pad, H=H)

    out2d = pl.pallas_call(
        kernel,
        out_shape=jax.ShapeDtypeStruct((N, H, WC_out), x_nchw.dtype),
        grid_spec=pltpu.PrefetchScalarGridSpec(
            num_scalar_prefetch=0,
            grid=(N,),
            in_specs=[
                pl.BlockSpec((1, H, WC_in), lambda n: (n, 0, 0)),
                _const_spec((K * WC_in, WC_out)),
                _const_spec((1, WC_out)),
                _const_spec((K * WC_out, WC_out)),
                _const_spec((1, WC_out)),
            ],
            out_specs=pl.BlockSpec((1, H, WC_out), lambda n: (n, 0, 0)),
        ),
        compiler_params=pltpu.CompilerParams(
            dimension_semantics=("parallel",),
            vmem_limit_bytes=32 * 1024 * 1024,
        ),
    )(x2d, w1b, b1r, w2b, b2r)

    # (N, H, W*C_out) -> NCHW to match the PyTorch output convention.
    return jnp.transpose(out2d.reshape(N, H, W, C_out), (0, 3, 1, 2))


def _xavier_normal(key, shape):
    # shape = (C_out, C_in, KH, KW); torch xavier_normal_: std = sqrt(2/(fan_in+fan_out))
    c_out, c_in, kh, kw = shape
    fan_in = c_in * kh * kw
    fan_out = c_out * kh * kw
    std = (2.0 / (fan_in + fan_out)) ** 0.5
    return std * jax.random.normal(key, shape, dtype=jnp.float32)


def _reference(x_nchw, w1, b1, w2, b2):
    dn = ("NCHW", "OIHW", "NCHW")
    hp = jax.lax.Precision.HIGHEST
    y = jax.lax.conv_general_dilated(x_nchw, w1, (1, 1), "SAME",
                                     dimension_numbers=dn, precision=hp)
    y = jnp.maximum(y + b1[None, :, None, None], 0.0)
    y = jax.lax.conv_general_dilated(y, w2, (1, 1), "SAME",
                                     dimension_numbers=dn, precision=hp)
    y = jnp.maximum(y + b2[None, :, None, None], 0.0)
    return y


if __name__ == "__main__":
    key = jax.random.PRNGKey(0)
    k_x, k_w1, k_w2 = jax.random.split(key, 3)

    N, C_in, H, W = 2, 4, 16, 16
    C_out, K = 8, 3

    x = jax.random.normal(k_x, (N, C_in, H, W), dtype=jnp.float32)

    # ConvStack.__init__ semantics: xavier_normal_ weights, zero biases (batch_norm=False).
    w1 = _xavier_normal(k_w1, (C_out, C_in, K, K))
    b1 = jnp.zeros((C_out,), dtype=jnp.float32)
    w2 = _xavier_normal(k_w2, (C_out, C_out, K, K))
    b2 = jnp.zeros((C_out,), dtype=jnp.float32)

    ref = _reference(x, w1, b1, w2, b2)

    # f32 banded weights: tight check of the kernel math.
    params_f32 = prepare_conv_stack_params(w1, b1, w2, b2, W, kernel_size=K,
                                           weight_dtype=jnp.float32)
    out_f32 = jax.block_until_ready(conv_stack_apply(x, *params_f32, kernel_size=K))
    assert out_f32.shape == (N, C_out, H, W)
    assert jnp.allclose(out_f32, ref, atol=1e-4, rtol=1e-4), "f32 mismatch vs reference conv"

    # bf16 banded weights (MXU-native, halves weight bytes): f32 accumulation, looser tol.
    params_bf16 = prepare_conv_stack_params(w1, b1, w2, b2, W, kernel_size=K,
                                            weight_dtype=jnp.bfloat16)
    out_bf16 = jax.block_until_ready(conv_stack_apply(x, *params_bf16, kernel_size=K))
    assert jnp.allclose(out_bf16, ref, atol=5e-2, rtol=5e-2), "bf16 mismatch vs reference conv"

    print("KERNEL_OK")
</pallas_src>

<mosaic_0001>
module attributes {stable_mosaic.version = 11 : i64} {
  func.func @_conv_stack_kernel(%arg0: i32, %arg1: memref<1x16x64xf32, #tpu.memory_space<vmem>>, %arg2: memref<192x128xf32, #tpu.memory_space<vmem>>, %arg3: memref<1x128xf32, #tpu.memory_space<vmem>>, %arg4: memref<384x128xf32, #tpu.memory_space<vmem>>, %arg5: memref<1x128xf32, #tpu.memory_space<vmem>>, %arg6: memref<1x16x128xf32, #tpu.memory_space<vmem>>) attributes {dimension_semantics = [#tpu.dimension_semantics<parallel>], iteration_bounds = array<i64: 2>, scalar_prefetch = 0 : i64, scratch_operands = 0 : i64, tpu.core_type = #tpu.core_type<tc>, window_params = [{transform_indices = @transform_0, window_bounds = array<i64: 1, 16, 64>}, {pipeline_mode = #tpu.pipeline_mode<synchronous>, transform_indices = @transform_1, window_bounds = array<i64: 192, 128>}, {pipeline_mode = #tpu.pipeline_mode<synchronous>, transform_indices = @transform_2, window_bounds = array<i64: 1, 128>}, {pipeline_mode = #tpu.pipeline_mode<synchronous>, transform_indices = @transform_3, window_bounds = array<i64: 384, 128>}, {pipeline_mode = #tpu.pipeline_mode<synchronous>, transform_indices = @transform_4, window_bounds = array<i64: 1, 128>}, {transform_indices = @transform_5, window_bounds = array<i64: 1, 16, 128>}]} {
    %c0 = arith.constant 0 : index
    %c0_0 = arith.constant 0 : index
    %c0_1 = arith.constant 0 : index
    %0 = vector.load %arg1[%c0, %c0_0, %c0_1] : memref<1x16x64xf32, #tpu.memory_space<vmem>>, vector<1x16x64xf32>
    %1 = vector.shape_cast %0 : vector<1x16x64xf32> to vector<16x64xf32>
    %c1_i32 = arith.constant 1 : i32
    %2 = tpu.dynamic_rotate %1 by %c1_i32 dim 0 : vector<16x64xf32>, i32 -> vector<16x64xf32>
    %3 = tpu.iota {dimensions = array<i32: 0>} : vector<16x64xi32>
    %c-1_i32 = arith.constant -1 : i32
    %4 = vector.broadcast %c-1_i32 : i32 to vector<16x64xi32>
    %5 = arith.addi %3, %4 : vector<16x64xi32>
    %c0_i32 = arith.constant 0 : i32
    %6 = vector.broadcast %c0_i32 : i32 to vector<16x64xi32>
    %7 = arith.cmpi sge, %5, %6 : vector<16x64xi32>
    %c-1_i32_2 = arith.constant -1 : i32
    %8 = vector.broadcast %c-1_i32_2 : i32 to vector<16x64xi32>
    %9 = arith.addi %3, %8 : vector<16x64xi32>
    %c16_i32 = arith.constant 16 : i32
    %10 = vector.broadcast %c16_i32 : i32 to vector<16x64xi32>
    %11 = arith.cmpi slt, %9, %10 : vector<16x64xi32>
    %12 = arith.andi %7, %11 : vector<16x64xi1>
    %cst = arith.constant 0.000000e+00 : f32
    %13 = vector.broadcast %cst : f32 to vector<16x64xf32>
    %14 = arith.select %12, %2, %13 : vector<16x64xi1>, vector<16x64xf32>
    %c15_i32 = arith.constant 15 : i32
    %15 = tpu.dynamic_rotate %1 by %c15_i32 dim 0 : vector<16x64xf32>, i32 -> vector<16x64xf32>
    %16 = tpu.iota {dimensions = array<i32: 0>} : vector<16x64xi32>
    %c1_i32_3 = arith.constant 1 : i32
    %17 = vector.broadcast %c1_i32_3 : i32 to vector<16x64xi32>
    %18 = arith.addi %16, %17 : vector<16x64xi32>
    %c0_i32_4 = arith.constant 0 : i32
    %19 = vector.broadcast %c0_i32_4 : i32 to vector<16x64xi32>
    %20 = arith.cmpi sge, %18, %19 : vector<16x64xi32>
    %c1_i32_5 = arith.constant 1 : i32
    %21 = vector.broadcast %c1_i32_5 : i32 to vector<16x64xi32>
    %22 = arith.addi %16, %21 : vector<16x64xi32>
    %c16_i32_6 = arith.constant 16 : i32
    %23 = vector.broadcast %c16_i32_6 : i32 to vector<16x64xi32>
    %24 = arith.cmpi slt, %22, %23 : vector<16x64xi32>
    %25 = arith.andi %20, %24 : vector<16x64xi1>
    %cst_7 = arith.constant 0.000000e+00 : f32
    %26 = vector.broadcast %cst_7 : f32 to vector<16x64xf32>
    %27 = arith.select %25, %15, %26 : vector<16x64xi1>, vector<16x64xf32>
    %28 = tpu.concatenate %14, %1, %27 in 1 : vector<16x64xf32>, vector<16x64xf32>, vector<16x64xf32> -> vector<16x192xf32>
    %c0_8 = arith.constant 0 : index
    %c0_9 = arith.constant 0 : index
    %29 = vector.load %arg2[%c0_8, %c0_9] : memref<192x128xf32, #tpu.memory_space<vmem>>, vector<192x128xf32>
    %cst_10 = arith.constant dense<0.000000e+00> : vector<16x128xf32>
    %30 = tpu.matmul %28, %29, %cst_10 {dimension_numbers = #tpu.dot_dimension_numbers<[1], [0], [0], [1], [0, 0, 1, 1], [], []>} : vector<16x192xf32>, vector<192x128xf32>, vector<16x128xf32> -> vector<16x128xf32>
    %c0_11 = arith.constant 0 : index
    %c0_12 = arith.constant 0 : index
    %31 = vector.load %arg3[%c0_11, %c0_12] : memref<1x128xf32, #tpu.memory_space<vmem>>, vector<1x128xf32>
    %32 = vector.broadcast %31 : vector<1x128xf32> to vector<16x128xf32>
    %33 = arith.addf %30, %32 : vector<16x128xf32>
    %cst_13 = arith.constant 0.000000e+00 : f32
    %34 = vector.broadcast %cst_13 : f32 to vector<16x128xf32>
    %35 = arith.maximumf %33, %34 : vector<16x128xf32>
    %c1_i32_14 = arith.constant 1 : i32
    %36 = tpu.dynamic_rotate %35 by %c1_i32_14 dim 0 : vector<16x128xf32>, i32 -> vector<16x128xf32>
    %37 = tpu.iota {dimensions = array<i32: 0>} : vector<16x128xi32>
    %c-1_i32_15 = arith.constant -1 : i32
    %38 = vector.broadcast %c-1_i32_15 : i32 to vector<16x128xi32>
    %39 = arith.addi %37, %38 : vector<16x128xi32>
    %c0_i32_16 = arith.constant 0 : i32
    %40 = vector.broadcast %c0_i32_16 : i32 to vector<16x128xi32>
    %41 = arith.cmpi sge, %39, %40 : vector<16x128xi32>
    %c-1_i32_17 = arith.constant -1 : i32
    %42 = vector.broadcast %c-1_i32_17 : i32 to vector<16x128xi32>
    %43 = arith.addi %37, %42 : vector<16x128xi32>
    %c16_i32_18 = arith.constant 16 : i32
    %44 = vector.broadcast %c16_i32_18 : i32 to vector<16x128xi32>
    %45 = arith.cmpi slt, %43, %44 : vector<16x128xi32>
    %46 = arith.andi %41, %45 : vector<16x128xi1>
    %cst_19 = arith.constant 0.000000e+00 : f32
    %47 = vector.broadcast %cst_19 : f32 to vector<16x128xf32>
    %48 = arith.select %46, %36, %47 : vector<16x128xi1>, vector<16x128xf32>
    %c15_i32_20 = arith.constant 15 : i32
    %49 = tpu.dynamic_rotate %35 by %c15_i32_20 dim 0 : vector<16x128xf32>, i32 -> vector<16x128xf32>
    %50 = tpu.iota {dimensions = array<i32: 0>} : vector<16x128xi32>
    %c1_i32_21 = arith.constant 1 : i32
    %51 = vector.broadcast %c1_i32_21 : i32 to vector<16x128xi32>
    %52 = arith.addi %50, %51 : vector<16x128xi32>
    %c0_i32_22 = arith.constant 0 : i32
    %53 = vector.broadcast %c0_i32_22 : i32 to vector<16x128xi32>
    %54 = arith.cmpi sge, %52, %53 : vector<16x128xi32>
    %c1_i32_23 = arith.constant 1 : i32
    %55 = vector.broadcast %c1_i32_23 : i32 to vector<16x128xi32>
    %56 = arith.addi %50, %55 : vector<16x128xi32>
    %c16_i32_24 = arith.constant 16 : i32
    %57 = vector.broadcast %c16_i32_24 : i32 to vector<16x128xi32>
    %58 = arith.cmpi slt, %56, %57 : vector<16x128xi32>
    %59 = arith.andi %54, %58 : vector<16x128xi1>
    %cst_25 = arith.constant 0.000000e+00 : f32
    %60 = vector.broadcast %cst_25 : f32 to vector<16x128xf32>
    %61 = arith.select %59, %49, %60 : vector<16x128xi1>, vector<16x128xf32>
    %62 = tpu.concatenate %48, %35, %61 in 1 : vector<16x128xf32>, vector<16x128xf32>, vector<16x128xf32> -> vector<16x384xf32>
    %c0_26 = arith.constant 0 : index
    %c0_27 = arith.constant 0 : index
    %63 = vector.load %arg4[%c0_26, %c0_27] : memref<384x128xf32, #tpu.memory_space<vmem>>, vector<384x128xf32>
    %cst_28 = arith.constant dense<0.000000e+00> : vector<16x128xf32>
    %64 = tpu.matmul %62, %63, %cst_28 {dimension_numbers = #tpu.dot_dimension_numbers<[1], [0], [0], [1], [0, 0, 1, 1], [], []>} : vector<16x384xf32>, vector<384x128xf32>, vector<16x128xf32> -> vector<16x128xf32>
    %c0_29 = arith.constant 0 : index
    %c0_30 = arith.constant 0 : index
    %65 = vector.load %arg5[%c0_29, %c0_30] : memref<1x128xf32, #tpu.memory_space<vmem>>, vector<1x128xf32>
    %66 = vector.broadcast %65 : vector<1x128xf32> to vector<16x128xf32>
    %67 = arith.addf %64, %66 : vector<16x128xf32>
    %cst_31 = arith.constant 0.000000e+00 : f32
    %68 = vector.broadcast %cst_31 : f32 to vector<16x128xf32>
    %69 = arith.maximumf %67, %68 : vector<16x128xf32>
    %c0_32 = arith.constant 0 : index
    %c0_33 = arith.constant 0 : index
    %c0_34 = arith.constant 0 : index
    %70 = vector.load %arg6[%c0_32, %c0_33, %c0_34] : memref<1x16x128xf32, #tpu.memory_space<vmem>>, vector<1x16x128xf32>
    %71 = vector.shape_cast %70 : vector<1x16x128xf32> to vector<16x128xf32>
    %72 = vector.shape_cast %69 : vector<16x128xf32> to vector<1x16x128xf32>
    tpu.vector_store %arg6[%c0_32, %c0_33, %c0_34], %72 {strides = array<i32>} : memref<1x16x128xf32, #tpu.memory_space<vmem>>, vector<1x16x128xf32>,
    return
  }
  func.func @transform_0(%arg0: i32) -> (i32, i32, i32) {
    %c0_i32 = arith.constant 0 : i32
    %c0_i32_0 = arith.constant 0 : i32
    %c0_i32_1 = arith.constant 0 : i32
    return %arg0, %c0_i32, %c0_i32_0 : i32, i32, i32
  }
  func.func @transform_1(%arg0: i32) -> (i32, i32) {
    %c0_i32 = arith.constant 0 : i32
    %c0_i32_0 = arith.constant 0 : i32
    %c0_i32_1 = arith.constant 0 : i32
    return %c0_i32, %c0_i32_0 : i32, i32
  }
  func.func @transform_2(%arg0: i32) -> (i32, i32) {
    %c0_i32 = arith.constant 0 : i32
    %c0_i32_0 = arith.constant 0 : i32
    %c0_i32_1 = arith.constant 0 : i32
    return %c0_i32, %c0_i32_0 : i32, i32
  }
  func.func @transform_3(%arg0: i32) -> (i32, i32) {
    %c0_i32 = arith.constant 0 : i32
    %c0_i32_0 = arith.constant 0 : i32
    %c0_i32_1 = arith.constant 0 : i32
    return %c0_i32, %c0_i32_0 : i32, i32
  }
  func.func @transform_4(%arg0: i32) -> (i32, i32) {
    %c0_i32 = arith.constant 0 : i32
    %c0_i32_0 = arith.constant 0 : i32
    %c0_i32_1 = arith.constant 0 : i32
    return %c0_i32, %c0_i32_0 : i32, i32
  }
  func.func @transform_5(%arg0: i32) -> (i32, i32, i32) {
    %c0_i32 = arith.constant 0 : i32
    %c0_i32_0 = arith.constant 0 : i32
    %c0_i32_1 = arith.constant 0 : i32
    return %arg0, %c0_i32, %c0_i32_0 : i32, i32, i32
  }
}

</mosaic_0001>

<llo_original>
// kernel: conv_stack_apply.1
$region0: #{conv_stack_apply.1}
  #allocation0 [shape = 'u32[]', space=smem, size = 0x4, offset = 0x4, fixed_abs, tag = 'smem constant byte address 0x4 - core index']
  #allocation1 [shape = 'u32[144,128]{1,0:T(1,128)}', space=vmem, size = 0x12000, scoped, tag = 'internal scratch']
  %s0 = inlined_call_operand.vmem [shape: f32[2,16,64], index: 0, kind: input, shape index: {}]
  %s1 = inlined_call_operand.hbm [shape: f32[192,128], index: 1, kind: input, shape index: {}]
  %s2 = inlined_call_operand.vmem [shape: f32[1,128], index: 2, kind: input, shape index: {}]
  %s3 = inlined_call_operand.vmem [shape: f32[384,128], index: 3, kind: input, shape index: {}]
  %s4 = inlined_call_operand.vmem [shape: f32[1,128], index: 4, kind: input, shape index: {}]
  %s5 = inlined_call_operand.vmem [shape: f32[2,16,128], index: 5, kind: output, shape index: {}]
  %s6 = sld [smem:[#allocation0]]
  $region57: #{conv_stack_apply.1} parent=0
    _
  %s8 = ssub.s32 1, %s6
  %s9 = scalar_select 0, %s8, %s6
  $region1: #{conv_stack_apply.1} parent=0
    #allocation2 [shape = 'u8[98304]{0}', space=vmem, size = 0x18000, scoped, tag = 'input window, operand 1, single buffered']
    #allocation3 [shape = 's32[2]{0}', space=sflag, size = 0x8, scoped, tag = 'scoped memory for conv_stack_apply.1']
    %10 = vsyncpa [#allocation3], 0
    loop: start=0, step=1, limit=4
    $region2: #{conv_stack_apply.1} parent=1 // loop_pre_header
      _
    $region3: #{conv_stack_apply.1} parent=1 // loop_header
      %s12 = sphi 0, %s16
      %p13 = scmp.ge.s32.totalorder %s12, 4
      %s22 = sphi 0, %s24
      %s25 = sphi 0, %s22
      %s26 = sphi 0, %s25
      %s42 = sphi 0, %s26
      %s46 = sphi 0, %s46
      %s48 = sphi 0, %s46
      %s49 = sphi 0, %s48
      %s63 = sphi 0, %s49
      %s67 = sphi 0, %s67
      %s69 = sphi 0, %s67
      %s70 = sphi 0, %s69
      %s84 = sphi 0, %s70
      %s88 = sphi 0, %s88
      %s90 = sphi 0, %s88
      %s91 = sphi 0, %s90
      %s105 = sphi 0, %s91
      %s109 = sphi 0, %s109
      %s111 = sphi 0, %s109
      %s112 = sphi 0, %s111
      %s126 = sphi 0, %s112
      %s132 = sphi 0, %s134
      %s135 = sphi 0, %s132
      %s136 = sphi 0, %s135
      %s152 = sphi 0, %s136
    $region4: #{conv_stack_apply.1} parent=1 // loop_header_branch
      %15 = sbr.rel (%p13) target = $region8
    $region5: #{conv_stack_apply.1} parent=1 // loop_body
      %s17 = ssub.s32 %s12, 1
      %s18 = ssub.s32 %s12, 2
      %s19 = sadd.s32 %s12, 1
      %s20 = ssub.s32 %s12, %s19
      %p21 = scmp.eq.s32.totalorder %s20, 0
      %s23 = sadd.s32 %s22, 1
      %s24 = scalar_select %p21, %s22, %s23
      %p27 = pneg %p21
      %p28 = scmp.eq.s32.totalorder %s12, 1
      %p29 = por %p27, %p28
      %p30 = scmp.ne.s32.totalorder %s22, %s25
      %p31 = scmp.eq.s32.totalorder %s12, 0
      %p32 = por %p30, %p31
      %p33 = scmp.ne.s32.totalorder %s22, %s25
      %p34 = scmp.eq.s32.totalorder %s17, 1
      %p35 = por %p33, %p34
      %p36 = scmp.ne.s32.totalorder %s25, %s26
      %p37 = scmp.eq.s32.totalorder %s17, 0
      %p38 = por %p36, %p37
      %p39 = scmp.ne.s32.totalorder %s25, %s26
      %p40 = scmp.eq.s32.totalorder %s18, 1
      %p41 = por %p39, %p40
      %p43 = scmp.ne.s32.totalorder %s26, %s42
      %p44 = scmp.eq.s32.totalorder %s18, 0
      %p45 = por %p43, %p44
      %s47 = sadd.s32 %s46, 1
      %p50 = scmp.eq.s32.totalorder %s12, 1
      %p51 = scmp.ne.s32.totalorder %s46, %s48
      %p52 = scmp.eq.s32.totalorder %s12, 0
      %p53 = por %p51, %p52
      %p54 = scmp.ne.s32.totalorder %s46, %s48
      %p55 = scmp.eq.s32.totalorder %s17, 1
      %p56 = por %p54, %p55
      %p57 = scmp.ne.s32.totalorder %s48, %s49
      %p58 = scmp.eq.s32.totalorder %s17, 0
      %p59 = por %p57, %p58
      %p60 = scmp.ne.s32.totalorder %s48, %s49
      %p61 = scmp.eq.s32.totalorder %s18, 1
      %p62 = por %p60, %p61
      %p64 = scmp.ne.s32.totalorder %s49, %s63
      %p65 = scmp.eq.s32.totalorder %s18, 0
      %p66 = por %p64, %p65
      %s68 = sadd.s32 %s67, 1
      %p71 = scmp.eq.s32.totalorder %s12, 1
      %p72 = scmp.ne.s32.totalorder %s67, %s69
      %p73 = scmp.eq.s32.totalorder %s12, 0
      %p74 = por %p72, %p73
      %p75 = scmp.ne.s32.totalorder %s67, %s69
      %p76 = scmp.eq.s32.totalorder %s17, 1
      %p77 = por %p75, %p76
      %p78 = scmp.ne.s32.totalorder %s69, %s70
      %p79 = scmp.eq.s32.totalorder %s17, 0
      %p80 = por %p78, %p79
      %p81 = scmp.ne.s32.totalorder %s69, %s70
      %p82 = scmp.eq.s32.totalorder %s18, 1
      %p83 = por %p81, %p82
      %p85 = scmp.ne.s32.totalorder %s70, %s84
      %p86 = scmp.eq.s32.totalorder %s18, 0
      %p87 = por %p85, %p86
      %s89 = sadd.s32 %s88, 1
      %p92 = scmp.eq.s32.totalorder %s12, 1
      %p93 = scmp.ne.s32.totalorder %s88, %s90
      %p94 = scmp.eq.s32.totalorder %s12, 0
      %p95 = por %p93, %p94
      %p96 = scmp.ne.s32.totalorder %s88, %s90
      %p97 = scmp.eq.s32.totalorder %s17, 1
      %p98 = por %p96, %p97
      %p99 = scmp.ne.s32.totalorder %s90, %s91
      %p100 = scmp.eq.s32.totalorder %s17, 0
      %p101 = por %p99, %p100
      %p102 = scmp.ne.s32.totalorder %s90, %s91
      %p103 = scmp.eq.s32.totalorder %s18, 1
      %p104 = por %p102, %p103
      %p106 = scmp.ne.s32.totalorder %s91, %s105
      %p107 = scmp.eq.s32.totalorder %s18, 0
      %p108 = por %p106, %p107
      %s110 = sadd.s32 %s109, 1
      %p113 = scmp.eq.s32.totalorder %s12, 1
      %p114 = scmp.ne.s32.totalorder %s109, %s111
      %p115 = scmp.eq.s32.totalorder %s12, 0
      %p116 = por %p114, %p115
      %p117 = scmp.ne.s32.totalorder %s109, %s111
      %p118 = scmp.eq.s32.totalorder %s17, 1
      %p119 = por %p117, %p118
      %p120 = scmp.ne.s32.totalorder %s111, %s112
      %p121 = scmp.eq.s32.totalorder %s17, 0
      %p122 = por %p120, %p121
      %p123 = scmp.ne.s32.totalorder %s111, %s112
      %p124 = scmp.eq.s32.totalorder %s18, 1
      %p125 = por %p123, %p124
      %p127 = scmp.ne.s32.totalorder %s112, %s126
      %p128 = scmp.eq.s32.totalorder %s18, 0
      %p129 = por %p127, %p128
      %s130 = ssub.s32 %s12, %s19
      %p131 = scmp.eq.s32.totalorder %s130, 0
      %s133 = sadd.s32 %s132, 1
      %s134 = scalar_select %p131, %s132, %s133
      %p137 = pneg %p131
      %p138 = scmp.eq.s32.totalorder %s12, 1
      %p139 = por %p137, %p138
      %p140 = scmp.ne.s32.totalorder %s132, %s135
      %p141 = scmp.eq.s32.totalorder %s12, 0
      %p142 = por %p140, %p141
      %p143 = scmp.ne.s32.totalorder %s132, %s135
      %p144 = scmp.eq.s32.totalorder %s17, 1
      %p145 = por %p143, %p144
      %p146 = scmp.ne.s32.totalorder %s135, %s136
      %p147 = scmp.eq.s32.totalorder %s17, 0
      %p148 = por %p146, %p147
      %p149 = scmp.ne.s32.totalorder %s135, %s136
      %p150 = scmp.eq.s32.totalorder %s18, 1
      %p151 = por %p149, %p150
      %p153 = scmp.ne.s32.totalorder %s136, %s152
      %p154 = scmp.eq.s32.totalorder %s18, 0
      %p155 = por %p153, %p154
      %p156 = scmp.le.s32.totalorder 1, %s12
      %p157 = scmp.lt.s32.totalorder %s12, 3
      %p158 = pnand %p156, %p157
      %p159 = pneg %p158
      // Predicated region
      $region9: #{conv_stack_apply.1} parent=5 // pred_check
        _
      $region10: #{conv_stack_apply.1} parent=5 // pred_check_branch
        %161 = sbr.rel (%p158) target = $region12
      $region11: #{conv_stack_apply.1} parent=5 // pred_region
        %s162 = ssub.s32 %s12, 1
        // Predicated region
        $region13: #{conv_stack_apply.1} parent=11 // pred_check
          %p163 = pneg %p59
        $region14: #{conv_stack_apply.1} parent=11 // pred_check_branch
          %165 = sbr.rel (%p163) target = $region16
        $region15: #{conv_stack_apply.1} parent=11 // pred_region
          %s167 = ssub.s32 3072, 3072
          %168 = vsyncadd [#allocation3], %s167
          %s169 = sshll.u32 [#allocation2], 4
          %s170 = int_to_ptr.vmem [resolvable:$true] %s169
          %175 = dma.hbm_to_vmem [thread:$0]  %s1, 3072, %s170, [#allocation3], 128, 128, 8
        $region16: #{conv_stack_apply.1} parent=11 // pred_fallthru
          _
        // Predicated region
        $region17: #{conv_stack_apply.1} parent=11 // pred_check
          %p176 = pneg %p80
        $region18: #{conv_stack_apply.1} parent=11 // pred_check_branch
          %178 = sbr.rel (%p176) target = $region20
        $region19: #{conv_stack_apply.1} parent=11 // pred_region
          _
        $region20: #{conv_stack_apply.1} parent=11 // pred_fallthru
          _
        // Predicated region
        $region21: #{conv_stack_apply.1} parent=11 // pred_check
          %p179 = pneg %p101
        $region22: #{conv_stack_apply.1} parent=11 // pred_check_branch
          %181 = sbr.rel (%p179) target = $region24
        $region23: #{conv_stack_apply.1} parent=11 // pred_region
          _
        $region24: #{conv_stack_apply.1} parent=11 // pred_fallthru
          _
        // Predicated region
        $region25: #{conv_stack_apply.1} parent=11 // pred_check
          %p182 = pneg %p122
        $region26: #{conv_stack_apply.1} parent=11 // pred_check_branch
          %184 = sbr.rel (%p182) target = $region28
        $region27: #{conv_stack_apply.1} parent=11 // pred_region
          _
        $region28: #{conv_stack_apply.1} parent=11 // pred_fallthru
          _
      $region12: #{conv_stack_apply.1} parent=5 // pred_fallthru
        _
      %p185 = scmp.lt.s32.totalorder %s12, 2
      // Predicated region
      $region29: #{conv_stack_apply.1} parent=5 // pred_check
        %p186 = pneg %p185
      $region30: #{conv_stack_apply.1} parent=5 // pred_check_branch
        %188 = sbr.rel (%p186) target = $region32
      $region31: #{conv_stack_apply.1} parent=5 // pred_region
        // Predicated region
        $region33: #{conv_stack_apply.1} parent=31 // pred_check
          %p189 = pneg %p32
        $region34: #{conv_stack_apply.1} parent=31 // pred_check_branch
          %191 = sbr.rel (%p189) target = $region36
        $region35: #{conv_stack_apply.1} parent=31 // pred_region
          %p192 = scmp.lt.s32.totalorder %s12, 1
          %s193 = scalar_select %p192, %s12, 1
          %s194 = smul.addr %s193, 2
          %s195 = smul.addr %s194, 8
          %s196 = scalar_lea.vmem %s0, %s195
        $region36: #{conv_stack_apply.1} parent=31 // pred_fallthru
          _
      $region32: #{conv_stack_apply.1} parent=5 // pred_fallthru
        _
      %p197 = scmp.le.s32.totalorder 1, %s12
      %p198 = scmp.lt.s32.totalorder %s12, 3
      %p199 = pnand %p197, %p198
      %p200 = pneg %p199
      // Predicated region
      $region37: #{conv_stack_apply.1} parent=5 // pred_check
        _
      $region38: #{conv_stack_apply.1} parent=5 // pred_check_branch
        %202 = sbr.rel (%p199) target = $region40
      $region39: #{conv_stack_apply.1} parent=5 // pred_region
        %s203 = ssub.s32 %s12, 1
        // Predicated region
        $region41: #{conv_stack_apply.1} parent=39 // pred_check
          %p204 = pneg %p59
        $region42: #{conv_stack_apply.1} parent=39 // pred_check_branch
          %206 = sbr.rel (%p204) target = $region44
        $region43: #{conv_stack_apply.1} parent=39 // pred_region
          %207 = dma.done [#allocation3], 3072
        $region44: #{conv_stack_apply.1} parent=39 // pred_fallthru
          _
        %p208 = scmp.lt.s32.totalorder %s17, 1
        %s209 = scalar_select %p208, %s17, 1
        %s210 = smul.addr %s209, 2
        %s211 = smul.addr %s210, 8
        %s212 = scalar_lea.vmem %s0, %s211
        %p213 = pneg %p38
        %p214 = pneg %p35
        %p215 = pneg %p59
        %p216 = pneg %p56
        %p217 = pneg %p80
        %p218 = pneg %p77
        %p219 = pneg %p101
        %p220 = pneg %p98
        %p221 = pneg %p122
        %p222 = pneg %p119
        %p223 = pneg %p148
        %p224 = pneg %p145
        %p225 = scmp.lt.s32.totalorder %s17, 1
        %s226 = scalar_select %p225, %s17, 1
        %s227 = smul.addr %s226, 2
        %s228 = smul.addr %s227, 8
        %s229 = scalar_lea.vmem %s5, %s228
        %p230 = scmp.lt.s32.totalorder %s17, 1
        %s231 = scalar_select %p230, %s17, 1
        %s232 = smul.addr %s231, 2
        %s233 = smul.addr %s232, 8
        %s234 = scalar_lea.vmem %s0, %s233
        %p235 = scmp.lt.s32.totalorder %s17, 1
        %s236 = scalar_select %p235, %s17, 1
        %s237 = smul.addr %s236, 2
        %s238 = smul.addr %s237, 8
        %s239 = scalar_lea.vmem %s5, %s238
        %v240 = vld [vmem:[%s234] sm:$0xff]
        %v241 = vld [vmem:[%s234 + $0x8] sm:$0xff]
        %v242 = vrot.slane %v240, 7
        %v243 = vrot.slane %v241, 7
        %v244 = vlaneseq
        %v245 = vshrl.u32 %v244, 7
        %vm246 = vcmp.lt.s32.totalorder %v245, 1
        %v247 = vsel %vm246, %v242, %v243
        %v248 = vsel %vm246, %v243, %v242
        %v249 = vadd.s32 %v245, 8
        %v250 = vadd.s32 %v245, 4294967295
        %v251 = vadd.s32 %v249, 4294967295
        %vm252 = vcmp.ge.s32.totalorder %v250, 0
        %vm253 = vcmp.ge.s32.totalorder %v251, 0
        %vm254 = vcmp.lt.s32.totalorder %v250, 16
        %vm255 = vcmp.lt.s32.totalorder %v251, 16
        %vm256 = vmand %vm252, %vm254
        %vm257 = vmand %vm253, %vm255
        %v258 = vsel %vm256, %v248, 0.0
        %v259 = vsel %vm257, %v247, 0.0
        %v260 = vrot.slane %v240, 1
        %v261 = vrot.slane %v241, 1
        %vm262 = vcmp.lt.s32.totalorder %v245, 7
        %v263 = vsel %vm262, %v260, %v261
        %v264 = vsel %vm262, %v261, %v260
        %v265 = vadd.s32 %v245, 1
        %v266 = vadd.s32 %v249, 1
        %vm267 = vcmp.ge.s32.totalorder %v265, 0
        %vm268 = vcmp.ge.s32.totalorder %v266, 0
        %vm269 = vcmp.lt.s32.totalorder %v265, 16
        %vm270 = vcmp.lt.s32.totalorder %v266, 16
        %vm271 = vmand %vm267, %vm269
        %vm272 = vmand %vm268, %vm270
        %v273 = vsel %vm271, %v263, 0.0
        %v274 = vsel %vm272, %v264, 0.0
        %277 = vrot.lane.b32.xlu0 %v240, 64
        %v278 = vpop.permute.xlu0 %277
        %279 = vrot.lane.b32.xlu0 %v241, 64
        %v280 = vpop.permute.xlu0 %279
        %vm283 = vcmask 523264
        %v284 = vsel %vm283, %v258, %v278
        %v285 = vsel %vm283, %v259, %v280
        %v286 = vld [vmem:[#allocation2] sm:$0xff]
        %v287 = vld [vmem:[#allocation2 + $0x8] sm:$0xff]
        %v288 = vld [vmem:[#allocation2 + $0x10] sm:$0xff]
        %v289 = vld [vmem:[#allocation2 + $0x18] sm:$0xff]
        %v290 = vld [vmem:[#allocation2 + $0x20] sm:$0xff]
        %v291 = vld [vmem:[#allocation2 + $0x28] sm:$0xff]
        %v292 = vld [vmem:[#allocation2 + $0x30] sm:$0xff]
        %v293 = vld [vmem:[#allocation2 + $0x38] sm:$0xff]
        %v294 = vld [vmem:[#allocation2 + $0x40] sm:$0xff]
        %v295 = vld [vmem:[#allocation2 + $0x48] sm:$0xff]
        %v296 = vld [vmem:[#allocation2 + $0x50] sm:$0xff]
        %v297 = vld [vmem:[#allocation2 + $0x58] sm:$0xff]
        %v298 = vld [vmem:[#allocation2 + $0x60] sm:$0xff]
        %v299 = vld [vmem:[#allocation2 + $0x68] sm:$0xff]
        %v300 = vld [vmem:[#allocation2 + $0x70] sm:$0xff]
        %v301 = vld [vmem:[#allocation2 + $0x78] sm:$0xff]
        %v302 = vld [vmem:[#allocation2 + $0x80] sm:$0xff]
        %v303 = vld [vmem:[#allocation2 + $0x88] sm:$0xff]
        %v304 = vld [vmem:[#allocation2 + $0x90] sm:$0xff]
        %v305 = vld [vmem:[#allocation2 + $0x98] sm:$0xff]
        %v306 = vld [vmem:[#allocation2 + $0xa0] sm:$0xff]
        %v307 = vld [vmem:[#allocation2 + $0xa8] sm:$0xff]
        %v308 = vld [vmem:[#allocation2 + $0xb0] sm:$0xff]
        %v309 = vld [vmem:[#allocation2 + $0xb8] sm:$0xff]
        %v310 = vld [vmem:[%s2] sm:$0x1]
        %v312 = vlaneseq
        %v313 = vshrl.u32 %v312, 7
        %v314 = vsub.s32 0, %v313
        %v315 = vrot.slane %v310, %v314
        %v318 = vsel %vm283, %v273, 0
        %v321 = vsel %vm283, %v274, 0
        %323 = vmatprep.subr.mxu0 0.0
        %324 = vmatpush1.msra.mxu0 %v301
        %325 = vmatprep.subr.mxu0 0.0
        %326 = vmatpush1.msra.mxu0 %v300
        %327 = vmatprep.subr.mxu0 0.0
        %328 = vmatpush1.msra.mxu0 %v299
        %329 = vmatprep.subr.mxu0 0.0
        %330 = vmatpush1.msra.mxu0 %v298
        %331 = vmatprep.subr.mxu0 0.0
        %332 = vmatpush1.msra.mxu0 %v297
        %333 = vmatprep.subr.mxu0 0.0
        %334 = vmatpush1.msra.mxu0 %v296
        %335 = vmatprep.subr.mxu0 0.0
        %336 = vmatpush1.msra.mxu0 %v295
        %337 = vmatprep.subr.mxu0 0.0
        %338 = vmatpush1.msra.mxu0 %v294
        %339 = vmatprep.subr.mxu0 0.0
        %340 = vmatpush1.msra.mxu0 %v293
        %341 = vmatprep.subr.mxu0 0.0
        %342 = vmatpush1.msra.mxu0 %v292
        %343 = vmatprep.subr.mxu0 0.0
        %344 = vmatpush1.msra.mxu0 %v291
        %345 = vmatprep.subr.mxu0 0.0
        %346 = vmatpush1.msra.mxu0 %v290
        %347 = vmatprep.subr.mxu0 0.0
        %348 = vmatpush1.msra.mxu0 %v289
        %349 = vmatprep.subr.mxu0 0.0
        %350 = vmatpush1.msra.mxu0 %v288
        %351 = vmatprep.subr.mxu0 0.0
        %352 = vmatpush1.msra.mxu0 %v287
        %353 = vmatprep.subr.mxu0 0.0
        %354 = vmatpush1.msra.mxu0 %v286
        %355 = vmatprep.subr.mxu0 0.0
        %356 = vmatpush2.msra.mxu0 0.0
        %357 = vmatprep.subr.mxu0 0.0
        %358 = vmatpush2.msra.mxu0 0.0
        %359 = vmatprep.subr.mxu0 0.0
        %360 = vmatpush2.msra.mxu0 0.0
        %361 = vmatprep.subr.mxu0 0.0
        %362 = vmatpush2.msra.mxu0 0.0
        %363 = vmatprep.subr.mxu0 0.0
        %364 = vmatpush2.msra.mxu0 0.0
        %365 = vmatprep.subr.mxu0 0.0
        %366 = vmatpush2.msra.mxu0 0.0
        %367 = vmatprep.subr.mxu0 0.0
        %368 = vmatpush2.msra.mxu0 0.0
        %369 = vmatprep.subr.mxu0 0.0
        %370 = vmatpush2.msra.mxu0 0.0
        %371 = vmatprep.subr.mxu0 0.0
        %372 = vmatpush2.msra.mxu0 %v309
        %373 = vmatprep.subr.mxu0 0.0
        %374 = vmatpush2.msra.mxu0 %v308
        %375 = vmatprep.subr.mxu0 0.0
        %376 = vmatpush2.msra.mxu0 %v307
        %377 = vmatprep.subr.mxu0 0.0
        %378 = vmatpush2.msra.mxu0 %v306
        %379 = vmatprep.subr.mxu0 0.0
        %380 = vmatpush2.msra.mxu0 %v305
        %381 = vmatprep.subr.mxu0 0.0
        %382 = vmatpush2.msra.mxu0 %v304
        %383 = vmatprep.subr.mxu0 0.0
        %384 = vmatpush2.msra.mxu0 %v303
        %385 = vmatprep.subr.mxu0 0.0
        %386 = vmatpush2.msra.mxu0 %v302
        %387 = vmatprep.mubr.f32.mxu0 %v318
        %388 = vmatmul.mubr.f32.gmra.mxu0 %v284
        %v389 = vpop.f32.mrf.mxu0
        %v390 = vadd.f32 %v315, %v389
        %v391 = vpop.f32.mrf.mxu0
        %392 = vmatprep.mubr.f32.mxu0 %v321
        %393 = vmatmul.mubr.f32.gmra.mxu0 %v285
        %v394 = vpop.f32.mrf.mxu0
        %v395 = vadd.f32 %v315, %v394
        %v396 = vpop.f32.mrf.mxu0
        %397 = vdwg.mxu0
        %v398 = vmax.f32 %v390, 0.0
        %v399 = vmax.f32 %v395, 0.0
        %v400 = vrot.slane %v398, 7
        %v401 = vrot.slane %v399, 7
        %v402 = vsel %vm246, %v400, %v401
        %v403 = vsel %vm246, %v401, %v400
        %v404 = vsel %vm256, %v403, 0.0
        %v405 = vsel %vm257, %v402, 0.0
        %v406 = vrot.slane %v398, 1
        %v407 = vrot.slane %v399, 1
        %v408 = vsel %vm262, %v406, %v407
        %v409 = vsel %vm262, %v407, %v406
        %v410 = vsel %vm271, %v408, 0.0
        %v411 = vsel %vm272, %v409, 0.0
        %v412 = vld [vmem:[%s3] sm:$0xff]
        %v413 = vld [vmem:[%s3 + $0x8] sm:$0xff]
        %v414 = vld [vmem:[%s3 + $0x10] sm:$0xff]
        %v415 = vld [vmem:[%s3 + $0x18] sm:$0xff]
        %v416 = vld [vmem:[%s3 + $0x20] sm:$0xff]
        %v417 = vld [vmem:[%s3 + $0x28] sm:$0xff]
        %v418 = vld [vmem:[%s3 + $0x30] sm:$0xff]
        %v419 = vld [vmem:[%s3 + $0x38] sm:$0xff]
        %v420 = vld [vmem:[%s3 + $0x40] sm:$0xff]
        %v421 = vld [vmem:[%s3 + $0x48] sm:$0xff]
        %v422 = vld [vmem:[%s3 + $0x50] sm:$0xff]
        %v423 = vld [vmem:[%s3 + $0x58] sm:$0xff]
        %v424 = vld [vmem:[%s3 + $0x60] sm:$0xff]
        %v425 = vld [vmem:[%s3 + $0x68] sm:$0xff]
        %v426 = vld [vmem:[%s3 + $0x70] sm:$0xff]
        %v427 = vld [vmem:[%s3 + $0x78] sm:$0xff]
        %v428 = vld [vmem:[%s3 + $0x80] sm:$0xff]
        %v429 = vld [vmem:[%s3 + $0x88] sm:$0xff]
        %v430 = vld [vmem:[%s3 + $0x90] sm:$0xff]
        %v431 = vld [vmem:[%s3 + $0x98] sm:$0xff]
        %v432 = vld [vmem:[%s3 + $0xa0] sm:$0xff]
        %v433 = vld [vmem:[%s3 + $0xa8] sm:$0xff]
        %v434 = vld [vmem:[%s3 + $0xb0] sm:$0xff]
        %v435 = vld [vmem:[%s3 + $0xb8] sm:$0xff]
        %v436 = vld [vmem:[%s3 + $0xc0] sm:$0xff]
        %v437 = vld [vmem:[%s3 + $0xc8] sm:$0xff]
        %v438 = vld [vmem:[%s3 + $0xd0] sm:$0xff]
        %v439 = vld [vmem:[%s3 + $0xd8] sm:$0xff]
        %v440 = vld [vmem:[%s3 + $0xe0] sm:$0xff]
        %v441 = vld [vmem:[%s3 + $0xe8] sm:$0xff]
        %v442 = vld [vmem:[%s3 + $0xf0] sm:$0xff]
        %v443 = vld [vmem:[%s3 + $0xf8] sm:$0xff]
        %v444 = vld [vmem:[%s3 + $0x100] sm:$0xff]
        %v445 = vld [vmem:[%s3 + $0x108] sm:$0xff]
        %v446 = vld [vmem:[%s3 + $0x110] sm:$0xff]
        %v447 = vld [vmem:[%s3 + $0x118] sm:$0xff]
        %v448 = vld [vmem:[%s3 + $0x120] sm:$0xff]
        %v449 = vld [vmem:[%s3 + $0x128] sm:$0xff]
        %v450 = vld [vmem:[%s3 + $0x130] sm:$0xff]
        %v451 = vld [vmem:[%s3 + $0x138] sm:$0xff]
        %v452 = vld [vmem:[%s3 + $0x140] sm:$0xff]
        %v453 = vld [vmem:[%s3 + $0x148] sm:$0xff]
        %v454 = vld [vmem:[%s3 + $0x150] sm:$0xff]
        %v455 = vld [vmem:[%s3 + $0x158] sm:$0xff]
        %v456 = vld [vmem:[%s3 + $0x160] sm:$0xff]
        %v457 = vld [vmem:[%s3 + $0x168] sm:$0xff]
        %v458 = vld [vmem:[%s3 + $0x170] sm:$0xff]
        %v459 = vld [vmem:[%s3 + $0x178] sm:$0xff]
        %v460 = vld [vmem:[%s4] sm:$0x1]
        %v462 = vlaneseq
        %v463 = vshrl.u32 %v462, 7
        %v464 = vsub.s32 0, %v463
        %v465 = vrot.slane %v460, %v464
        %467 = vmatprep.subr.mxu0 0.0
        %468 = vmatpush1.msra.mxu0 %v427
        %469 = vmatprep.subr.mxu0 0.0
        %470 = vmatpush1.msra.mxu0 %v426
        %471 = vmatprep.subr.mxu0 0.0
        %472 = vmatpush1.msra.mxu0 %v425
        %473 = vmatprep.subr.mxu0 0.0
        %474 = vmatpush1.msra.mxu0 %v424
        %475 = vmatprep.subr.mxu0 0.0
        %476 = vmatpush1.msra.mxu0 %v423
        %477 = vmatprep.subr.mxu0 0.0
        %478 = vmatpush1.msra.mxu0 %v422
        %479 = vmatprep.subr.mxu0 0.0
        %480 = vmatpush1.msra.mxu0 %v421
        %481 = vmatprep.subr.mxu0 0.0
        %482 = vmatpush1.msra.mxu0 %v420
        %483 = vmatprep.subr.mxu0 0.0
        %484 = vmatpush1.msra.mxu0 %v419
        %485 = vmatprep.subr.mxu0 0.0
        %486 = vmatpush1.msra.mxu0 %v418
        %487 = vmatprep.subr.mxu0 0.0
        %488 = vmatpush1.msra.mxu0 %v417
        %489 = vmatprep.subr.mxu0 0.0
        %490 = vmatpush1.msra.mxu0 %v416
        %491 = vmatprep.subr.mxu0 0.0
        %492 = vmatpush1.msra.mxu0 %v415
        %493 = vmatprep.subr.mxu0 0.0
        %494 = vmatpush1.msra.mxu0 %v414
        %495 = vmatprep.subr.mxu0 0.0
        %496 = vmatpush1.msra.mxu0 %v413
        %497 = vmatprep.subr.mxu0 0.0
        %498 = vmatpush1.msra.mxu0 %v412
        %499 = vmatprep.subr.mxu0 0.0
        %500 = vmatpush2.msra.mxu0 %v443
        %501 = vmatprep.subr.mxu0 0.0
        %502 = vmatpush2.msra.mxu0 %v442
        %503 = vmatprep.subr.mxu0 0.0
        %504 = vmatpush2.msra.mxu0 %v441
        %505 = vmatprep.subr.mxu0 0.0
        %506 = vmatpush2.msra.mxu0 %v440
        %507 = vmatprep.subr.mxu0 0.0
        %508 = vmatpush2.msra.mxu0 %v439
        %509 = vmatprep.subr.mxu0 0.0
        %510 = vmatpush2.msra.mxu0 %v438
        %511 = vmatprep.subr.mxu0 0.0
        %512 = vmatpush2.msra.mxu0 %v437
        %513 = vmatprep.subr.mxu0 0.0
        %514 = vmatpush2.msra.mxu0 %v436
        %515 = vmatprep.subr.mxu0 0.0
        %516 = vmatpush2.msra.mxu0 %v435
        %517 = vmatprep.subr.mxu0 0.0
        %518 = vmatpush2.msra.mxu0 %v434
        %519 = vmatprep.subr.mxu0 0.0
        %520 = vmatpush2.msra.mxu0 %v433
        %521 = vmatprep.subr.mxu0 0.0
        %522 = vmatpush2.msra.mxu0 %v432
        %523 = vmatprep.subr.mxu0 0.0
        %524 = vmatpush2.msra.mxu0 %v431
        %525 = vmatprep.subr.mxu0 0.0
        %526 = vmatpush2.msra.mxu0 %v430
        %527 = vmatprep.subr.mxu0 0.0
        %528 = vmatpush2.msra.mxu0 %v429
        %529 = vmatprep.subr.mxu0 0.0
        %530 = vmatpush2.msra.mxu0 %v428
        %531 = vmatprep.mubr.f32.mxu0 %v398
        %532 = vmatmul.mubr.f32.gmra.mxu0 %v404
        %v533 = vpop.f32.mrf.mxu0
        %v534 = vadd.f32 %v465, %v533
        %v535 = vpop.f32.mrf.mxu0
        %536 = vmatprep.mubr.f32.mxu0 %v399
        %537 = vmatmul.mubr.f32.gmra.mxu0 %v405
        %v538 = vpop.f32.mrf.mxu0
        %v539 = vadd.f32 %v465, %v538
        %v540 = vpop.f32.mrf.mxu0
        %541 = vdwg.mxu0
        %542 = vmatprep.subr.mxu0 0.0
        %543 = vmatpush1.msra.mxu0 %v459
        %544 = vmatprep.subr.mxu0 0.0
        %545 = vmatpush1.msra.mxu0 %v458
        %546 = vmatprep.subr.mxu0 0.0
        %547 = vmatpush1.msra.mxu0 %v457
        %548 = vmatprep.subr.mxu0 0.0
        %549 = vmatpush1.msra.mxu0 %v456
        %550 = vmatprep.subr.mxu0 0.0
        %551 = vmatpush1.msra.mxu0 %v455
        %552 = vmatprep.subr.mxu0 0.0
        %553 = vmatpush1.msra.mxu0 %v454
        %554 = vmatprep.subr.mxu0 0.0
        %555 = vmatpush1.msra.mxu0 %v453
        %556 = vmatprep.subr.mxu0 0.0
        %557 = vmatpush1.msra.mxu0 %v452
        %558 = vmatprep.subr.mxu0 0.0
        %559 = vmatpush1.msra.mxu0 %v451
        %560 = vmatprep.subr.mxu0 0.0
        %561 = vmatpush1.msra.mxu0 %v450
        %562 = vmatprep.subr.mxu0 0.0
        %563 = vmatpush1.msra.mxu0 %v449
        %564 = vmatprep.subr.mxu0 0.0
        %565 = vmatpush1.msra.mxu0 %v448
        %566 = vmatprep.subr.mxu0 0.0
        %567 = vmatpush1.msra.mxu0 %v447
        %568 = vmatprep.subr.mxu0 0.0
        %569 = vmatpush1.msra.mxu0 %v446
        %570 = vmatprep.subr.mxu0 0.0
        %571 = vmatpush1.msra.mxu0 %v445
        %572 = vmatprep.subr.mxu0 0.0
        %573 = vmatpush1.msra.mxu0 %v444
        %574 = vmatprep.subr.mxu0 0.0
        %575 = vmatpush2.msra.mxu0 0.0
        %576 = vmatprep.subr.mxu0 0.0
        %577 = vmatpush2.msra.mxu0 0.0
        %578 = vmatprep.subr.mxu0 0.0
        %579 = vmatpush2.msra.mxu0 0.0
        %580 = vmatprep.subr.mxu0 0.0
        %581 = vmatpush2.msra.mxu0 0.0
        %582 = vmatprep.subr.mxu0 0.0
        %583 = vmatpush2.msra.mxu0 0.0
        %584 = vmatprep.subr.mxu0 0.0
        %585 = vmatpush2.msra.mxu0 0.0
        %586 = vmatprep.subr.mxu0 0.0
        %587 = vmatpush2.msra.mxu0 0.0
        %588 = vmatprep.subr.mxu0 0.0
        %589 = vmatpush2.msra.mxu0 0.0
        %590 = vmatprep.subr.mxu0 0.0
        %591 = vmatpush2.msra.mxu0 0.0
        %592 = vmatprep.subr.mxu0 0.0
        %593 = vmatpush2.msra.mxu0 0.0
        %594 = vmatprep.subr.mxu0 0.0
        %595 = vmatpush2.msra.mxu0 0.0
        %596 = vmatprep.subr.mxu0 0.0
        %597 = vmatpush2.msra.mxu0 0.0
        %598 = vmatprep.subr.mxu0 0.0
        %599 = vmatpush2.msra.mxu0 0.0
        %600 = vmatprep.subr.mxu0 0.0
        %601 = vmatpush2.msra.mxu0 0.0
        %602 = vmatprep.subr.mxu0 0.0
        %603 = vmatpush2.msra.mxu0 0.0
        %604 = vmatprep.subr.mxu0 0.0
        %605 = vmatpush2.msra.mxu0 0.0
        %606 = vmatprep.mubr.f32.mxu0 0.0
        %607 = vmatmul.mubr.f32.gmra.mxu0 %v410
        %v608 = vpop.f32.mrf.mxu0
        %v609 = vadd.f32 %v534, %v608
        %v610 = vpop.f32.mrf.mxu0
        %611 = vmatprep.mubr.f32.mxu0 0.0
        %612 = vmatmul.mubr.f32.gmra.mxu0 %v411
        %v613 = vpop.f32.mrf.mxu0
        %v614 = vadd.f32 %v539, %v613
        %v615 = vpop.f32.mrf.mxu0
        %616 = vdwg.mxu0
        %v617 = vmax.f32 %v609, 0.0
        %v618 = vmax.f32 %v614, 0.0
        %619 = vst [vmem:[%s239] sm:$0xff] %v617
        %620 = vst [vmem:[%s239 + $0x8] sm:$0xff] %v618
        %p621 = scmp.lt.s32.totalorder %s17, 1
        %s622 = scalar_select %p621, %s17, 1
        %s623 = smul.addr %s622, 2
        %s624 = smul.addr %s623, 8
        %s625 = scalar_lea.vmem %s5, %s624
        // Predicated region
        $region45: #{conv_stack_apply.1} parent=39 // pred_check
          %p626 = pneg %p145
        $region46: #{conv_stack_apply.1} parent=39 // pred_check_branch
          %628 = sbr.rel (%p626) target = $region48
        $region47: #{conv_stack_apply.1} parent=39 // pred_region
          _
        $region48: #{conv_stack_apply.1} parent=39 // pred_fallthru
          _
      $region40: #{conv_stack_apply.1} parent=5 // pred_fallthru
        _
      %p629 = scmp.le.s32.totalorder 2, %s12
      // Predicated region
      $region49: #{conv_stack_apply.1} parent=5 // pred_check
        %p630 = pneg %p629
      $region50: #{conv_stack_apply.1} parent=5 // pred_check_branch
        %632 = sbr.rel (%p630) target = $region52
      $region51: #{conv_stack_apply.1} parent=5 // pred_region
        %s633 = ssub.s32 %s12, 2
        // Predicated region
        $region53: #{conv_stack_apply.1} parent=51 // pred_check
          %p634 = pneg %p151
        $region54: #{conv_stack_apply.1} parent=51 // pred_check_branch
          %636 = sbr.rel (%p634) target = $region56
        $region55: #{conv_stack_apply.1} parent=51 // pred_region
          %p637 = scmp.lt.s32.totalorder %s18, 1
          %s638 = scalar_select %p637, %s18, 1
          %s639 = smul.addr %s638, 2
          %s640 = smul.addr %s639, 8
          %s641 = scalar_lea.vmem %s5, %s640
        $region56: #{conv_stack_apply.1} parent=51 // pred_fallthru
          _
      $region52: #{conv_stack_apply.1} parent=5 // pred_fallthru
        _
    $region6: #{conv_stack_apply.1} parent=1 // loop_footer
      %s16 = sadd.s32 1, %s12
    $region7: #{conv_stack_apply.1} parent=1 // loop_footer_branch
      %11 = sbr.rel target = $region3
    $region8: #{conv_stack_apply.1} parent=1 // loop_exit
      _
    %642 = vsyncpa [#allocation3], 1
    %s643 = scalar_lea.sflag [#allocation3], 1
    %644 = vsyncpa %s643, 1

</llo_original>
